<compile_context>
chip_gen: v7x
topology: tpu7x:2x2x1
jax: 0.10.0
libtpu: 0.0.40
codegen_flags: <defaults>
</compile_context>

<pallas_src>
import functools

import jax
import jax.numpy as jnp
from jax.experimental import pallas as pl
from jax.experimental.pallas import tpu as pltpu

LANE = 128
_DEFAULT_VMEM_LIMIT = 48 * 1024 * 1024        # scoped VMEM request (ok on v5e/v6e/v7x)
_DEFAULT_EMB_STREAM_BUDGET = 32 * 1024 * 1024  # budget for the double-buffered emb block


def _round_up(x, m):
    return (x + m - 1) // m * m


# ----------------------------- Pallas kernels --------------------------------
def _pooled_head_single_kernel(emb_ref, w_ref, b_ref, logp_ref):
    """Single-pass: whole token axis in one block.  Grid: (sent_tiles,).

      emb_ref  [TS, Tp, H]  (bf16 or f32)  mask/invlen already folded in
      w_ref    [H, Lp] f32  (pad columns are 0)
      b_ref    [1, Lp] f32  (pad lanes are -1e30)
      logp_ref [TS, Lp] f32 lane-dense log-prob slab
    """
    sent_repr = jnp.sum(emb_ref[...].astype(jnp.float32), axis=1)       # [TS, H]
    logits = jnp.dot(sent_repr, w_ref[...],
                     preferred_element_type=jnp.float32) + b_ref[...]   # [TS, Lp]
    m = jnp.max(logits, axis=-1, keepdims=True)
    z = logits - m
    logp_ref[...] = z - jnp.log(jnp.sum(jnp.exp(z), axis=-1, keepdims=True))


def _pooled_head_reduce_kernel(emb_ref, w_ref, b_ref, logp_ref, acc_ref):
    """Token-reduction variant.  Grid: (sent_tiles ["parallel"],
    tok_tiles ["arbitrary"]).  acc_ref [TS, H] f32 is the running token sum."""
    tk = pl.program_id(1)

    @pl.when(tk == 0)
    def _init():
        acc_ref[...] = jnp.zeros_like(acc_ref)

    acc_ref[...] += jnp.sum(emb_ref[...].astype(jnp.float32), axis=1)

    @pl.when(tk == pl.num_programs(1) - 1)
    def _finalize():
        logits = jnp.dot(acc_ref[...], w_ref[...],
                         preferred_element_type=jnp.float32) + b_ref[...]
        m = jnp.max(logits, axis=-1, keepdims=True)
        z = logits - m
        logp_ref[...] = z - jnp.log(jnp.sum(jnp.exp(z), axis=-1, keepdims=True))


# --------------------------- tile selection -----------------------------------
def _choose_tiles(S, T, H, itemsize, sent_tile, tok_tile, emb_budget_bytes):
    """VMEM/H-aware tile heuristic.  Keeps the emb block's double buffer under
    `emb_budget_bytes`, prefers collapsing the token axis, and keeps >= 2
    sentence tiles so the 'parallel' axis can split across TensorCores."""
    tok_sub = 16 if itemsize < 4 else 8            # sublane multiple for the token axis
    if sent_tile is None:
        sent_tile = min(256, _round_up(max(S, 8), 8))
        if S > 8 and (S + sent_tile - 1) // sent_tile < 2:
            sent_tile = _round_up((S + 1) // 2, 8)  # >= 2 sentence tiles
    sent_tile = max(8, _round_up(sent_tile, 8))

    t_full = _round_up(max(T, tok_sub), tok_sub)
    if tok_tile is None:
        tok_tile = t_full                           # collapse token axis when it fits
    tok_tile = min(max(tok_sub, _round_up(tok_tile, tok_sub)), t_full)

    # Shrink until 2x (double-buffered) emb block fits the VMEM budget.
    while 2 * sent_tile * tok_tile * H * itemsize > emb_budget_bytes and tok_tile > tok_sub:
        tok_tile = max(tok_sub, _round_up(tok_tile // 2, tok_sub))
    while 2 * sent_tile * tok_tile * H * itemsize > emb_budget_bytes and sent_tile > 8:
        sent_tile = max(8, _round_up(sent_tile // 2, 8))
    return sent_tile, tok_tile


# --------------------------- batched predict ----------------------------------
def predict_all_docs(tok_emb, mask, inv_lens, w, b, *,
                     store_dtype=jnp.bfloat16,
                     sent_tile=None, tok_tile=None,
                     emb_vmem_budget_bytes=_DEFAULT_EMB_STREAM_BUDGET,
                     vmem_limit_bytes=_DEFAULT_VMEM_LIMIT):
    """One batched pallas_call over all sentences of all documents.

    tok_emb  [S, T, H] f32   embedded tokens (zero-padded along T)
    mask     [S, T]    f32   per-sentence token mask
    inv_lens [S]       f32   1 / tokens-per-sentence
    w, b     [H, L], [1, L]  classification head
    returns  logp [S, L] f32 per-sentence label log-likelihoods
    """
    S, T, H = tok_emb.shape
    L = w.shape[1]
    Lp = _round_up(max(L, LANE), LANE)

    itemsize = jnp.dtype(store_dtype).itemsize
    sent_tile, tok_tile = _choose_tiles(S, T, H, itemsize, sent_tile, tok_tile,
                                        emb_vmem_budget_bytes)
    Sp = _round_up(S, sent_tile)
    Tp = _round_up(T, tok_tile)

    # Fold mask and 1/len into the token stream on the XLA side (fuses with the
    # gather that materialized tok_emb); store the dominant stream in bf16.
    scale = mask * inv_lens[:, None]                                   # [S, T]
    emb_scaled = tok_emb * scale[..., None]                            # f32
    emb_p = jnp.pad(emb_scaled,
                    ((0, Sp - S), (0, Tp - T), (0, 0))).astype(store_dtype)

    # Label head padded to a 128-lane slab: pad w columns with 0, pad bias
    # lanes with -1e30 so padded label lanes vanish in the log-softmax with
    # no in-kernel iota/where.
    w_p = jnp.pad(w.astype(jnp.float32), ((0, 0), (0, Lp - L)))
    b_p = jnp.pad(b.reshape(1, -1).astype(jnp.float32),
                  ((0, 0), (0, Lp - L)), constant_values=-1e30)

    n_sent_tiles = Sp // sent_tile
    n_tok_tiles = Tp // tok_tile
    # TODO(synk): when vocab*H fits VMEM, pass token IDs and keep the embedding
    # table resident in-kernel instead of materializing emb_all (order-of-
    # magnitude HBM-traffic win); not done here to keep the wrapper generic.

    if n_tok_tiles == 1:
        # Single-pass kernel: no token grid axis, no accumulator scratch.
        logp_padded = pl.pallas_call(
            _pooled_head_single_kernel,
            out_shape=jax.ShapeDtypeStruct((Sp, Lp), jnp.float32),
            grid_spec=pltpu.PrefetchScalarGridSpec(
                num_scalar_prefetch=0,
                grid=(n_sent_tiles,),
                in_specs=[
                    pl.BlockSpec((sent_tile, Tp, H), lambda i: (i, 0, 0)),
                    pl.BlockSpec((H, Lp), lambda i: (0, 0)),
                    pl.BlockSpec((1, Lp), lambda i: (0, 0)),
                ],
                out_specs=pl.BlockSpec((sent_tile, Lp), lambda i: (i, 0)),
            ),
            compiler_params=pltpu.CompilerParams(
                dimension_semantics=("parallel",),
                vmem_limit_bytes=vmem_limit_bytes),
        )(emb_p, w_p, b_p)
    else:
        logp_padded = pl.pallas_call(
            _pooled_head_reduce_kernel,
            out_shape=jax.ShapeDtypeStruct((Sp, Lp), jnp.float32),
            grid_spec=pltpu.PrefetchScalarGridSpec(
                num_scalar_prefetch=0,
                grid=(n_sent_tiles, n_tok_tiles),
                in_specs=[
                    pl.BlockSpec((sent_tile, tok_tile, H), lambda i, k: (i, k, 0)),
                    pl.BlockSpec((H, Lp), lambda i, k: (0, 0)),
                    pl.BlockSpec((1, Lp), lambda i, k: (0, 0)),
                ],
                out_specs=pl.BlockSpec((sent_tile, Lp), lambda i, k: (i, 0)),
                scratch_shapes=[pltpu.VMEM((sent_tile, H), jnp.float32)],
            ),
            compiler_params=pltpu.CompilerParams(
                dimension_semantics=("parallel", "arbitrary"),
                vmem_limit_bytes=vmem_limit_bytes),
        )(emb_p, w_p, b_p)

    return logp_padded[:S, :L]


# --------------------------- module-level forward ----------------------------
def base_discriminator_forward(input_ids, labels, attention_mask, input_lens,
                               add_features, params, return_lls=False,
                               store_dtype=jnp.bfloat16,
                               sent_tile=None, tok_tile=None):
    """Mirrors BaseDiscriminator.forward (non-multitask branch).

    input_ids:      list of [N_d] int32 flat token-id arrays (one per doc)
    labels:         list of [S_d] int sentence labels
    attention_mask: list of [S_d, T_d] per-sentence token masks
    input_lens:     list of [S_d] tokens-per-sentence
    """
    emb_table, w, b = params["emb"], params["w"], params["b"]
    H = emb_table.shape[1]

    # ---- glue: gather every doc's sentences into one padded batch ----------
    T_max = max(int(a.shape[1]) for a in attention_mask)
    emb_chunks, mask_chunks, inv_chunks, lab_chunks, doc_sents = [], [], [], [], []
    for X, y, a_f, a, s in zip(input_ids, labels, add_features,
                               attention_mask, input_lens):
        if X.ndim == 0:              # matches `if len(X.shape) == 0: continue`
            continue
        S_d, T_d = a.shape
        assert X.shape[0] == S_d * T_d
        tok_emb = jnp.take(emb_table, X.astype(jnp.int32), axis=0)
        tok_emb = tok_emb.reshape(S_d, T_d, H).astype(jnp.float32)
        a32 = a.astype(jnp.float32)
        if T_d < T_max:
            tok_emb = jnp.pad(tok_emb, ((0, 0), (0, T_max - T_d), (0, 0)))
            a32 = jnp.pad(a32, ((0, 0), (0, T_max - T_d)))
        emb_chunks.append(tok_emb)
        mask_chunks.append(a32)
        # TODO(synk): zero-length sentences give inf/NaN (same as torch divide).
        inv_chunks.append(1.0 / s.astype(jnp.float32))
        lab_chunks.append(y.astype(jnp.int32))
        doc_sents.append(S_d)

    emb_all = jnp.concatenate(emb_chunks, axis=0)        # [Stot, Tmax, H]
    mask_all = jnp.concatenate(mask_chunks, axis=0)      # [Stot, Tmax]
    inv_all = jnp.concatenate(inv_chunks, axis=0)        # [Stot]
    labels_all = jnp.concatenate(lab_chunks, axis=0)     # [Stot]
    s_tot = int(emb_all.shape[0])

    # ---- one batched Pallas kernel over every sentence in the batch --------
    logp_all = predict_all_docs(emb_all, mask_all, inv_all, w, b,
                                store_dtype=store_dtype,
                                sent_tile=sent_tile, tok_tile=tok_tile)

    # ---- tiny per-sentence reductions stay in plain XLA ---------------------
    y_preds = jnp.argmax(logp_all, axis=1).astype(jnp.int32)          # [Stot]
    nll = -jnp.take_along_axis(logp_all, labels_all[:, None], axis=1)[:, 0]

    # Matches `loss = torch.sum(loss)` — sums the *last* doc's loss tensor.
    loss = jnp.sum(nll[s_tot - doc_sents[-1]:])

    # num_labels_pred_window is None -> concatenation across docs.
    ys = labels_all

    if not return_lls:
        return loss, y_preds, ys, add_features

    y_pred_lls, off = [], 0
    for S_d in doc_sents:
        y_pred_lls.append(logp_all[off:off + S_d])
        off += S_d
    return loss, y_preds, ys, add_features, y_pred_lls


# ---------------------------------- main -------------------------------------
if __name__ == "__main__":
    key = jax.random.PRNGKey(0)
    k_emb, k_w, k_b, k_ids, k_len, k_lab = jax.random.split(key, 6)

    VOCAB, H, L = 64, 32, 4       # hidden=32, num_labels=4
    B, S, T = 2, 8, 32            # 2 docs, 8 sentences/doc, 32 tokens/sentence
    N = S * T                     # flat tokens per doc

    params = {
        "emb": 0.02 * jax.random.normal(k_emb, (VOCAB, H), jnp.float32),
        "w":   0.1 * jax.random.normal(k_w, (H, L), jnp.float32),
        "b":   0.1 * jax.random.normal(k_b, (1, L), jnp.float32),
    }

    input_ids, labels, attention_mask, input_lens = [], [], [], []
    add_features = [None] * B
    for d in range(B):
        kd_ids = jax.random.fold_in(k_ids, d)
        kd_len = jax.random.fold_in(k_len, d)
        kd_lab = jax.random.fold_in(k_lab, d)
        ids = jax.random.randint(kd_ids, (N,), 0, VOCAB, dtype=jnp.int32)
        lens = jax.random.randint(kd_len, (S,), 1, T + 1, dtype=jnp.int32)
        lab = jax.random.randint(kd_lab, (S,), 0, L, dtype=jnp.int32)
        # per-sentence token mask: first lens[s] tokens are valid
        amask = (jnp.arange(T)[None, :] < lens[:, None]).astype(jnp.float32)

        input_ids.append(ids)
        labels.append(lab)
        attention_mask.append(amask)
        input_lens.append(lens.astype(jnp.float32))

    # ---- pure-JAX reference (same bf16 quantization of the scaled stream) ---
    ref_preds, ref_last_loss = [], None
    for ids, lab, amask, lens in zip(input_ids, labels, attention_mask,
                                     input_lens):
        emb = jnp.take(params["emb"], ids, axis=0).reshape(S, T, H)
        scale = amask * (1.0 / lens)[:, None]
        scaled = (emb * scale[:, :, None]).astype(jnp.bfloat16).astype(jnp.float32)
        sent = jnp.sum(scaled, axis=1)
        logits = sent @ params["w"] + params["b"]
        lp = jax.nn.log_softmax(logits, axis=-1)
        ref_preds.append(jnp.argmax(lp, axis=1))
        ref_last_loss = jnp.sum(
            -jnp.take_along_axis(lp, lab[:, None], axis=1)[:, 0])
    ref_preds = jnp.concatenate(ref_preds).astype(jnp.int32)

    # (1) explicit small tiles -> grid (2, 2): exercises the token-reduction
    #     kernel ("parallel" sentence axis + accumulated "arbitrary" axis).
    loss_r, preds_r, ys_r, _ = base_discriminator_forward(
        input_ids, labels, attention_mask, input_lens, add_features, params,
        sent_tile=8, tok_tile=16)
    # (2) defaults -> token axis collapsed into one block: single-pass kernel.
    loss_s, preds_s, ys_s, _ = base_discriminator_forward(
        input_ids, labels, attention_mask, input_lens, add_features, params)
    jax.block_until_ready((loss_r, preds_r, ys_r, loss_s, preds_s, ys_s))

    for loss, preds, ys in ((loss_r, preds_r, ys_r), (loss_s, preds_s, ys_s)):
        assert preds.shape == (B * S,)
        assert ys.shape == (B * S,)
        assert loss.shape == ()
        assert bool(jnp.array_equal(preds, ref_preds))
        assert bool(jnp.allclose(loss, ref_last_loss, rtol=1e-4, atol=1e-4))
    print("KERNEL_OK")
</pallas_src>

<mosaic_0001>
module attributes {stable_mosaic.version = 11 : i64} {
  func.func @_pooled_head_reduce_kernel(%arg0: i32, %arg1: i32, %arg2: memref<8x16x32xbf16, #tpu.memory_space<vmem>>, %arg3: memref<32x128xf32, #tpu.memory_space<vmem>>, %arg4: memref<1x128xf32, #tpu.memory_space<vmem>>, %arg5: memref<8x128xf32, #tpu.memory_space<vmem>>, %arg6: memref<8x32xf32, #tpu.memory_space<vmem>>) attributes {dimension_semantics = [#tpu.dimension_semantics<parallel>, #tpu.dimension_semantics<arbitrary>], iteration_bounds = array<i64: 2, 2>, scalar_prefetch = 0 : i64, scratch_operands = 1 : i64, tpu.core_type = #tpu.core_type<tc>, window_params = [{transform_indices = @transform_0, window_bounds = array<i64: 8, 16, 32>}, {pipeline_mode = #tpu.pipeline_mode<synchronous>, transform_indices = @transform_1, window_bounds = array<i64: 32, 128>}, {pipeline_mode = #tpu.pipeline_mode<synchronous>, transform_indices = @transform_2, window_bounds = array<i64: 1, 128>}, {transform_indices = @transform_3, window_bounds = array<i64: 8, 128>}]} {
    %c0_i32 = arith.constant 0 : i32
    %0 = arith.cmpi eq, %arg1, %c0_i32 : i32
    %1 = arith.extui %0 : i1 to i32
    %c0_i32_0 = arith.constant 0 : i32
    %2 = arith.cmpi ne, %1, %c0_i32_0 : i32
    scf.if %2 {
      %cst_8 = arith.constant 0.000000e+00 : f32
      %12 = vector.broadcast %cst_8 : f32 to vector<8x32xf32>
      %c0_9 = arith.constant 0 : index
      %c0_10 = arith.constant 0 : index
      %13 = vector.load %arg6[%c0_9, %c0_10] : memref<8x32xf32, #tpu.memory_space<vmem>>, vector<8x32xf32>
      tpu.vector_store %arg6[%c0_9, %c0_10], %12 {strides = array<i32>} : memref<8x32xf32, #tpu.memory_space<vmem>>, vector<8x32xf32>,
    } else {
    }
    %c0 = arith.constant 0 : index
    %c0_1 = arith.constant 0 : index
    %3 = vector.load %arg6[%c0, %c0_1] : memref<8x32xf32, #tpu.memory_space<vmem>>, vector<8x32xf32>
    %c0_2 = arith.constant 0 : index
    %c0_3 = arith.constant 0 : index
    %c0_4 = arith.constant 0 : index
    %4 = vector.load %arg2[%c0_2, %c0_3, %c0_4] : memref<8x16x32xbf16, #tpu.memory_space<vmem>>, vector<8x16x32xbf16>
    %5 = arith.extf %4 : vector<8x16x32xbf16> to vector<8x16x32xf32>
    %cst = arith.constant dense<0.000000e+00> : vector<8x32xf32>
    %6 = vector.multi_reduction <add>, %5, %cst [1] : vector<8x16x32xf32> to vector<8x32xf32>
    %7 = arith.addf %3, %6 : vector<8x32xf32>
    %c0_5 = arith.constant 0 : index
    %c0_6 = arith.constant 0 : index
    %8 = vector.load %arg6[%c0_5, %c0_6] : memref<8x32xf32, #tpu.memory_space<vmem>>, vector<8x32xf32>
    tpu.vector_store %arg6[%c0_5, %c0_6], %7 {strides = array<i32>} : memref<8x32xf32, #tpu.memory_space<vmem>>, vector<8x32xf32>,
    %c1_i32 = arith.constant 1 : i32
    %9 = arith.cmpi eq, %arg1, %c1_i32 : i32
    %10 = arith.extui %9 : i1 to i32
    %c0_i32_7 = arith.constant 0 : i32
    %11 = arith.cmpi ne, %10, %c0_i32_7 : i32
    scf.if %11 {
      %c0_8 = arith.constant 0 : index
      %c0_9 = arith.constant 0 : index
      %12 = vector.load %arg6[%c0_8, %c0_9] : memref<8x32xf32, #tpu.memory_space<vmem>>, vector<8x32xf32>
      %c0_10 = arith.constant 0 : index
      %c0_11 = arith.constant 0 : index
      %13 = vector.load %arg3[%c0_10, %c0_11] : memref<32x128xf32, #tpu.memory_space<vmem>>, vector<32x128xf32>
      %cst_12 = arith.constant dense<0.000000e+00> : vector<8x128xf32>
      %14 = tpu.matmul %12, %13, %cst_12 {dimension_numbers = #tpu.dot_dimension_numbers<[1], [0], [0], [1], [0, 0, 1, 1], [], []>} : vector<8x32xf32>, vector<32x128xf32>, vector<8x128xf32> -> vector<8x128xf32>
      %c0_13 = arith.constant 0 : index
      %c0_14 = arith.constant 0 : index
      %15 = vector.load %arg4[%c0_13, %c0_14] : memref<1x128xf32, #tpu.memory_space<vmem>>, vector<1x128xf32>
      %16 = vector.broadcast %15 : vector<1x128xf32> to vector<8x128xf32>
      %17 = arith.addf %14, %16 : vector<8x128xf32>
      %cst_15 = arith.constant dense<0xFF800000> : vector<8xf32>
      %18 = vector.multi_reduction <maximumf>, %17, %cst_15 [1] : vector<8x128xf32> to vector<8xf32>
      %19 = vector.shape_cast %18 : vector<8xf32> to vector<8x1xf32>
      %20 = vector.broadcast %19 : vector<8x1xf32> to vector<8x128xf32>
      %21 = arith.subf %17, %20 : vector<8x128xf32>
      %22 = math.exp %21 : vector<8x128xf32>
      %cst_16 = arith.constant dense<0.000000e+00> : vector<8xf32>
      %23 = vector.multi_reduction <add>, %22, %cst_16 [1] : vector<8x128xf32> to vector<8xf32>
      %24 = vector.shape_cast %23 : vector<8xf32> to vector<8x1xf32>
      %25 = math.log %24 : vector<8x1xf32>
      %26 = vector.broadcast %25 : vector<8x1xf32> to vector<8x128xf32>
      %27 = arith.subf %21, %26 : vector<8x128xf32>
      %c0_17 = arith.constant 0 : index
      %c0_18 = arith.constant 0 : index
      %28 = vector.load %arg5[%c0_17, %c0_18] : memref<8x128xf32, #tpu.memory_space<vmem>>, vector<8x128xf32>
      tpu.vector_store %arg5[%c0_17, %c0_18], %27 {strides = array<i32>} : memref<8x128xf32, #tpu.memory_space<vmem>>, vector<8x128xf32>,
    } else {
    }
    return
  }
  func.func @transform_0(%arg0: i32, %arg1: i32) -> (i32, i32, i32) {
    %c0_i32 = arith.constant 0 : i32
    %c0_i32_0 = arith.constant 0 : i32
    return %arg0, %arg1, %c0_i32 : i32, i32, i32
  }
  func.func @transform_1(%arg0: i32, %arg1: i32) -> (i32, i32) {
    %c0_i32 = arith.constant 0 : i32
    %c0_i32_0 = arith.constant 0 : i32
    %c0_i32_1 = arith.constant 0 : i32
    return %c0_i32, %c0_i32_0 : i32, i32
  }
  func.func @transform_2(%arg0: i32, %arg1: i32) -> (i32, i32) {
    %c0_i32 = arith.constant 0 : i32
    %c0_i32_0 = arith.constant 0 : i32
    %c0_i32_1 = arith.constant 0 : i32
    return %c0_i32, %c0_i32_0 : i32, i32
  }
  func.func @transform_3(%arg0: i32, %arg1: i32) -> (i32, i32) {
    %c0_i32 = arith.constant 0 : i32
    %c0_i32_0 = arith.constant 0 : i32
    return %arg0, %c0_i32 : i32, i32
  }
}

</mosaic_0001>

<llo_original>
// kernel: tpu_custom_call.1
$region0: #{tpu_custom_call.1}
  #allocation0 [shape = 'u32[]', space=smem, size = 0x4, offset = 0x4, fixed_abs, tag = 'smem constant byte address 0x4 - core index']
  #allocation1 [shape = 'u32[144,128]{1,0:T(1,128)}', space=vmem, size = 0x12000, scoped, tag = 'internal scratch']
  #allocation2 [shape = 'f32[8,32]{1,0:T(8,128)}', space=vmem, size = 0x1000, scoped, tag = 'scratch operand']
  #allocation9 [shape = 's32[]', space=sflag, size = 0x4, offset = 0, fixed_abs, tag = 'sflag constant byte address 0x0 - dummy sync flag']
  %s0 = inlined_call_operand.hbm [shape: bf16[16,32,32], index: 0, kind: input, shape index: {}]
  %s1 = inlined_call_operand.hbm [shape: f32[32,128], index: 1, kind: input, shape index: {}]
  %s2 = inlined_call_operand.vmem [shape: f32[1,128], index: 2, kind: input, shape index: {}]
  %s3 = inlined_call_operand.hbm [shape: f32[16,128], index: 3, kind: output, shape index: {}]
  %s4 = sld [smem:[#allocation0]]
  $region61: #{tpu_custom_call.1} parent=0
    _
  %s6 = ssub.s32 1, %s4
  %s7 = scalar_select 0, %s6, %s4
  $region1: #{tpu_custom_call.1} parent=0
    #allocation3 [shape = 'u8[65536]{0}', space=vmem, size = 0x10000, scoped, tag = 'input window, operand 0']
    #allocation4 [shape = 's32[2]{0}', space=sflag, size = 0x8, scoped, tag = 'scoped memory for tpu_custom_call.1']
    #allocation5 [shape = 's32[2]{0}', space=sflag, size = 0x8, scoped, tag = 'scoped memory for tpu_custom_call.1']
    #allocation6 [shape = 'u8[16384]{0}', space=vmem, size = 0x4000, scoped, tag = 'input window, operand 1, single buffered']
    #allocation7 [shape = 's32[1]{0}', space=sflag, size = 0x4, scoped, tag = 'scoped memory for tpu_custom_call.1']
    #allocation8 [shape = 'u8[8192]{0}', space=vmem, size = 0x2000, scoped, tag = 'output window, operand 0']
    %8 = vsyncpa [#allocation4], 0
    %s9 = scalar_lea.sflag [#allocation4], 1
    %10 = vsyncpa %s9, 0
    %11 = vsyncpa [#allocation7], 0
    %12 = vsyncpa [#allocation5], 0
    %s13 = scalar_lea.sflag [#allocation5], 1
    %14 = vsyncpa %s13, 0
    loop: start=0, step=1, limit=6
    $region2: #{tpu_custom_call.1} parent=1 // loop_pre_header
      _
    $region3: #{tpu_custom_call.1} parent=1 // loop_header
      %s16 = sphi 0, %s20
      %p17 = scmp.ge.s32.totalorder %s16, 6
      %s23 = sphi 0, %s35
      %s24 = sphi 0, %s31
      %s25 = sphi 0, %s23
      %s26 = sphi 0, %s24
      %s27 = sphi 0, %s25
      %s28 = sphi 0, %s26
      %s40 = sphi 0, %s42
      %s43 = sphi 0, %s40
      %s44 = sphi 0, %s43
      %s60 = sphi 0, %s44
      %s64 = sphi 0, %s64
      %s66 = sphi 0, %s64
      %s67 = sphi 0, %s66
      %s81 = sphi 0, %s67
      %s85 = sphi 0, %s85
      %s87 = sphi 0, %s85
      %s88 = sphi 0, %s87
      %s102 = sphi 0, %s88
      %s108 = sphi 0, %s110
      %s111 = sphi 0, %s108
      %s112 = sphi 0, %s111
      %s128 = sphi 0, %s112
    $region4: #{tpu_custom_call.1} parent=1 // loop_header_branch
      %19 = sbr.rel (%p17) target = $region8
    $region5: #{tpu_custom_call.1} parent=1 // loop_body
      %s21 = ssub.s32 %s16, 1
      %s22 = ssub.s32 %s16, 2
      %s29 = sadd.s32 1, %s24
      %p30 = scmp.ge.s32.totalorder %s29, 2
      %s31 = scalar_select %p30, 0, %s29
      %s32 = sadd.s32 1, %s23
      %s33 = scalar_select %p30, %s32, %s23
      %p34 = scmp.ge.s32.totalorder %s33, 2
      %s35 = scalar_select %p34, 0, %s33
      %s36 = ssub.s32 %s23, %s35
      %s37 = ssub.s32 %s24, %s31
      %s38 = sor.u32 %s36, %s37
      %p39 = scmp.eq.s32.totalorder %s38, 0
      %s41 = sadd.s32 %s40, 1
      %s42 = scalar_select %p39, %s40, %s41
      %p45 = pneg %p39
      %p46 = scmp.eq.s32.totalorder %s16, 3
      %p47 = por %p45, %p46
      %p48 = scmp.ne.s32.totalorder %s40, %s43
      %p49 = scmp.eq.s32.totalorder %s16, 0
      %p50 = por %p48, %p49
      %p51 = scmp.ne.s32.totalorder %s40, %s43
      %p52 = scmp.eq.s32.totalorder %s21, 3
      %p53 = por %p51, %p52
      %p54 = scmp.ne.s32.totalorder %s43, %s44
      %p55 = scmp.eq.s32.totalorder %s21, 0
      %p56 = por %p54, %p55
      %p57 = scmp.ne.s32.totalorder %s43, %s44
      %p58 = scmp.eq.s32.totalorder %s22, 3
      %p59 = por %p57, %p58
      %p61 = scmp.ne.s32.totalorder %s44, %s60
      %p62 = scmp.eq.s32.totalorder %s22, 0
      %p63 = por %p61, %p62
      %s65 = sadd.s32 %s64, 1
      %p68 = scmp.eq.s32.totalorder %s16, 3
      %p69 = scmp.ne.s32.totalorder %s64, %s66
      %p70 = scmp.eq.s32.totalorder %s16, 0
      %p71 = por %p69, %p70
      %p72 = scmp.ne.s32.totalorder %s64, %s66
      %p73 = scmp.eq.s32.totalorder %s21, 3
      %p74 = por %p72, %p73
      %p75 = scmp.ne.s32.totalorder %s66, %s67
      %p76 = scmp.eq.s32.totalorder %s21, 0
      %p77 = por %p75, %p76
      %p78 = scmp.ne.s32.totalorder %s66, %s67
      %p79 = scmp.eq.s32.totalorder %s22, 3
      %p80 = por %p78, %p79
      %p82 = scmp.ne.s32.totalorder %s67, %s81
      %p83 = scmp.eq.s32.totalorder %s22, 0
      %p84 = por %p82, %p83
      %s86 = sadd.s32 %s85, 1
      %p89 = scmp.eq.s32.totalorder %s16, 3
      %p90 = scmp.ne.s32.totalorder %s85, %s87
      %p91 = scmp.eq.s32.totalorder %s16, 0
      %p92 = por %p90, %p91
      %p93 = scmp.ne.s32.totalorder %s85, %s87
      %p94 = scmp.eq.s32.totalorder %s21, 3
      %p95 = por %p93, %p94
      %p96 = scmp.ne.s32.totalorder %s87, %s88
      %p97 = scmp.eq.s32.totalorder %s21, 0
      %p98 = por %p96, %p97
      %p99 = scmp.ne.s32.totalorder %s87, %s88
      %p100 = scmp.eq.s32.totalorder %s22, 3
      %p101 = por %p99, %p100
      %p103 = scmp.ne.s32.totalorder %s88, %s102
      %p104 = scmp.eq.s32.totalorder %s22, 0
      %p105 = por %p103, %p104
      %s106 = ssub.s32 %s23, %s35
      %p107 = scmp.eq.s32.totalorder %s106, 0
      %s109 = sadd.s32 %s108, 1
      %s110 = scalar_select %p107, %s108, %s109
      %p113 = pneg %p107
      %p114 = scmp.eq.s32.totalorder %s16, 3
      %p115 = por %p113, %p114
      %p116 = scmp.ne.s32.totalorder %s108, %s111
      %p117 = scmp.eq.s32.totalorder %s16, 0
      %p118 = por %p116, %p117
      %p119 = scmp.ne.s32.totalorder %s108, %s111
      %p120 = scmp.eq.s32.totalorder %s21, 3
      %p121 = por %p119, %p120
      %p122 = scmp.ne.s32.totalorder %s111, %s112
      %p123 = scmp.eq.s32.totalorder %s21, 0
      %p124 = por %p122, %p123
      %p125 = scmp.ne.s32.totalorder %s111, %s112
      %p126 = scmp.eq.s32.totalorder %s22, 3
      %p127 = por %p125, %p126
      %p129 = scmp.ne.s32.totalorder %s112, %s128
      %p130 = scmp.eq.s32.totalorder %s22, 0
      %p131 = por %p129, %p130
      %p132 = scmp.le.s32.totalorder 1, %s16
      %p133 = scmp.lt.s32.totalorder %s16, 5
      %p134 = pnand %p132, %p133
      %p135 = pneg %p134
      // Predicated region
      $region9: #{tpu_custom_call.1} parent=5 // pred_check
        _
      $region10: #{tpu_custom_call.1} parent=5 // pred_check_branch
        %137 = sbr.rel (%p134) target = $region12
      $region11: #{tpu_custom_call.1} parent=5 // pred_region
        %s138 = ssub.s32 %s16, 1
        // Predicated region
        $region13: #{tpu_custom_call.1} parent=11 // pred_check
          %p139 = pneg %p77
        $region14: #{tpu_custom_call.1} parent=11 // pred_check_branch
          %141 = sbr.rel (%p139) target = $region16
        $region15: #{tpu_custom_call.1} parent=11 // pred_region
          %s143 = ssub.s32 512, 512
          %144 = vsyncadd [#allocation7], %s143
          %s145 = sshll.u32 [#allocation6], 4
          %s146 = int_to_ptr.vmem [resolvable:$true] %s145
          %151 = dma.hbm_to_vmem [thread:$0]  %s1, 512, %s146, [#allocation7], 128, 128, 8
        $region16: #{tpu_custom_call.1} parent=11 // pred_fallthru
          _
        // Predicated region
        $region17: #{tpu_custom_call.1} parent=11 // pred_check
          %p152 = pneg %p98
        $region18: #{tpu_custom_call.1} parent=11 // pred_check_branch
          %154 = sbr.rel (%p152) target = $region20
        $region19: #{tpu_custom_call.1} parent=11 // pred_region
          _
        $region20: #{tpu_custom_call.1} parent=11 // pred_fallthru
          _
      $region12: #{tpu_custom_call.1} parent=5 // pred_fallthru
        _
      %p155 = scmp.lt.s32.totalorder %s16, 4
      // Predicated region
      $region21: #{tpu_custom_call.1} parent=5 // pred_check
        %p156 = pneg %p155
      $region22: #{tpu_custom_call.1} parent=5 // pred_check_branch
        %158 = sbr.rel (%p156) target = $region24
      $region23: #{tpu_custom_call.1} parent=5 // pred_region
        // Predicated region
        $region25: #{tpu_custom_call.1} parent=23 // pred_check
          %p159 = pneg %p50
        $region26: #{tpu_custom_call.1} parent=23 // pred_check_branch
          %161 = sbr.rel (%p159) target = $region28
        $region27: #{tpu_custom_call.1} parent=23 // pred_region
          #allocation10 [shape = 'u32[6]{0}', space=smem, size = 0x18, scoped, tag = 'DMA stride descriptor']
          %s162 = sand.u32 %s40, 1
          %s163 = scalar_lea.sflag [#allocation4], %s162
          %s164 = sand.u32 %s40, 1
          %s165 = smul.addr %s164, 64
          %s166 = scalar_lea.vmem [#allocation3], %s165
          %s167 = smul.u32 8, %s23
          %s168 = smul.u32 2, %s24
          %s170 = ssub.s32 1024, 1024
          %171 = vsyncadd %s163, %s170
          %s172 = smul.addr %s167, 4
          %s173 = sadd.s32 %s168, %s172
          %s174 = smul.addr %s173, 64
          %s175 = scalar_lea.hbm %s0, %s174
          %s177 = sshll.u32 1, 14
          %s178 = sxor.u32 4294967295, %s177
          %s180 = sld [smem:[#allocation0]]
          %s181 = sadd.s32 2, %s180
          %s183 = sshll.u32 7, 26
          %s184 = sxor.u32 4294967295, %s183
          %s185 = sand.u32 0, %s184
          %s186 = sshll.u32 %s181, 26
          %s187 = sor.u32 %s185, %s186
          %s188 = sshll.u32 %s166, 4
          %s189 = int_to_ptr.vmem [resolvable:$true] %s188
          %195 = sst [smem:[#allocation10]] 256
          %s196 = scalar_lea.smem [#allocation10], 1
          %197 = sst [smem:[%s196]] 128
          %s198 = scalar_lea.smem [#allocation10], 2
          %199 = sst [smem:[%s198]] 2
          %s200 = scalar_lea.smem [#allocation10], 3
          %201 = sst [smem:[%s200]] 64
          %s202 = scalar_lea.smem [#allocation10], 4
          %203 = sst [smem:[%s202]] 64
          %s204 = scalar_lea.smem [#allocation10], 5
          %205 = sst [smem:[%s204]] 4
          %207 = dma.general %s175, 1024, %s189, %s163, [#allocation9], [#allocation10], %s187, 0
        $region28: #{tpu_custom_call.1} parent=23 // pred_fallthru
          _
      $region24: #{tpu_custom_call.1} parent=5 // pred_fallthru
        _
      %p208 = scmp.le.s32.totalorder 1, %s16
      %p209 = scmp.lt.s32.totalorder %s16, 5
      %p210 = pnand %p208, %p209
      %p211 = pneg %p210
      // Predicated region
      $region29: #{tpu_custom_call.1} parent=5 // pred_check
        _
      $region30: #{tpu_custom_call.1} parent=5 // pred_check_branch
        %213 = sbr.rel (%p210) target = $region32
      $region31: #{tpu_custom_call.1} parent=5 // pred_region
        %s214 = ssub.s32 %s16, 1
        %s215 = sand.u32 %s43, 1
        %s216 = scalar_lea.sflag [#allocation4], %s215
        %s217 = sand.u32 %s43, 1
        %s218 = smul.addr %s217, 64
        %s219 = scalar_lea.vmem [#allocation3], %s218
        // Predicated region
        $region33: #{tpu_custom_call.1} parent=31 // pred_check
          %p220 = pneg %p56
        $region34: #{tpu_custom_call.1} parent=31 // pred_check_branch
          %222 = sbr.rel (%p220) target = $region36
        $region35: #{tpu_custom_call.1} parent=31 // pred_region
          %223 = dma.done %s216, 1024
        $region36: #{tpu_custom_call.1} parent=31 // pred_fallthru
          _
        // Predicated region
        $region37: #{tpu_custom_call.1} parent=31 // pred_check
          %p224 = pneg %p77
        $region38: #{tpu_custom_call.1} parent=31 // pred_check_branch
          %226 = sbr.rel (%p224) target = $region40
        $region39: #{tpu_custom_call.1} parent=31 // pred_region
          %227 = dma.done [#allocation7], 512
        $region40: #{tpu_custom_call.1} parent=31 // pred_fallthru
          _
        %s228 = sand.u32 %s43, 1
        %s229 = scalar_lea.sflag [#allocation4], %s228
        %s230 = sand.u32 %s43, 1
        %s231 = smul.addr %s230, 64
        %s232 = scalar_lea.vmem [#allocation3], %s231
        %p233 = pneg %p56
        %p234 = pneg %p53
        %p235 = pneg %p77
        %p236 = pneg %p74
        %p237 = pneg %p98
        %p238 = pneg %p95
        %p239 = pneg %p124
        %p240 = pneg %p121
        %s241 = sand.u32 %s111, 1
        %s242 = scalar_lea.sflag [#allocation5], %s241
        %s243 = sand.u32 %s111, 1
        %s244 = smul.addr %s243, 8
        %s245 = scalar_lea.vmem [#allocation8], %s244
        %s246 = smul.u32 8, %s25
        %s247 = smul.u32 2, %s26
        %p248 = scmp.eq.s32.totalorder %s26, 0
        // Predicated region
        $region41: #{tpu_custom_call.1} parent=31 // pred_check
          %p249 = pneg %p248
        $region42: #{tpu_custom_call.1} parent=31 // pred_check_branch
          %251 = sbr.rel (%p249) target = $region44
        $region43: #{tpu_custom_call.1} parent=31 // pred_region
          %vm252 = vcmask 261120
          %253 = vst.msk [vmem:[#allocation2] sm:$0xff] %vm252, 0.0
        $region44: #{tpu_custom_call.1} parent=31 // pred_fallthru
          _
        %v254 = vld [vmem:[#allocation2] sm:$0xff]
        %v255 = vld [vmem:[%s219] sm:$0xf]
        %v256 = vld [vmem:[%s219 + $0x4] sm:$0xf]
        %v257 = vld [vmem:[%s219 + $0x8] sm:$0xf]
        %v258 = vld [vmem:[%s219 + $0xc] sm:$0xf]
        %v259 = vld [vmem:[%s219 + $0x10] sm:$0xf]
        %v260 = vld [vmem:[%s219 + $0x14] sm:$0xf]
        %v261 = vld [vmem:[%s219 + $0x18] sm:$0xf]
        %v262 = vld [vmem:[%s219 + $0x1c] sm:$0xf]
        %v263 = vld [vmem:[%s219 + $0x20] sm:$0xf]
        %v264 = vld [vmem:[%s219 + $0x24] sm:$0xf]
        %v265 = vld [vmem:[%s219 + $0x28] sm:$0xf]
        %v266 = vld [vmem:[%s219 + $0x2c] sm:$0xf]
        %v267 = vld [vmem:[%s219 + $0x30] sm:$0xf]
        %v268 = vld [vmem:[%s219 + $0x34] sm:$0xf]
        %v269 = vld [vmem:[%s219 + $0x38] sm:$0xf]
        %v270 = vld [vmem:[%s219 + $0x3c] sm:$0xf]
        %v271 = vunpack.c.l.bf16 %v255
        %v272 = vunpack.c.l.bf16 %v256
        %v273 = vunpack.c.l.bf16 %v257
        %v274 = vunpack.c.l.bf16 %v258
        %v275 = vunpack.c.l.bf16 %v259
        %v276 = vunpack.c.l.bf16 %v260
        %v277 = vunpack.c.l.bf16 %v261
        %v278 = vunpack.c.l.bf16 %v262
        %v279 = vunpack.c.l.bf16 %v263
        %v280 = vunpack.c.l.bf16 %v264
        %v281 = vunpack.c.l.bf16 %v265
        %v282 = vunpack.c.l.bf16 %v266
        %v283 = vunpack.c.l.bf16 %v267
        %v284 = vunpack.c.l.bf16 %v268
        %v285 = vunpack.c.l.bf16 %v269
        %v286 = vunpack.c.l.bf16 %v270
        %vm287 = vcmask 261120
        %v288 = vsel %vm287, %v271, 0.0
        %v289 = vsel %vm287, %v272, 0.0
        %v290 = vadd.f32 %v288, %v289
        %v291 = vrot.slane %v290, 4
        %v292 = vadd.f32 %v290, %v291
        %v293 = vrot.slane %v292, 2
        %v294 = vadd.f32 %v292, %v293
        %v295 = vrot.slane %v294, 1
        %v296 = vadd.f32 %v294, %v295
        %v297 = vsel %vm287, %v273, 0.0
        %v298 = vsel %vm287, %v274, 0.0
        %v299 = vadd.f32 %v297, %v298
        %v300 = vrot.slane %v299, 4
        %v301 = vadd.f32 %v299, %v300
        %v302 = vrot.slane %v301, 2
        %v303 = vadd.f32 %v301, %v302
        %v304 = vrot.slane %v303, 1
        %v305 = vadd.f32 %v303, %v304
        %v306 = vsel %vm287, %v275, 0.0
        %v307 = vsel %vm287, %v276, 0.0
        %v308 = vadd.f32 %v306, %v307
        %v309 = vrot.slane %v308, 4
        %v310 = vadd.f32 %v308, %v309
        %v311 = vrot.slane %v310, 2
        %v312 = vadd.f32 %v310, %v311
        %v313 = vrot.slane %v312, 1
        %v314 = vadd.f32 %v312, %v313
        %v315 = vsel %vm287, %v277, 0.0
        %v316 = vsel %vm287, %v278, 0.0
        %v317 = vadd.f32 %v315, %v316
        %v318 = vrot.slane %v317, 4
        %v319 = vadd.f32 %v317, %v318
        %v320 = vrot.slane %v319, 2
        %v321 = vadd.f32 %v319, %v320
        %v322 = vrot.slane %v321, 1
        %v323 = vadd.f32 %v321, %v322
        %v324 = vsel %vm287, %v279, 0.0
        %v325 = vsel %vm287, %v280, 0.0
        %v326 = vadd.f32 %v324, %v325
        %v327 = vrot.slane %v326, 4
        %v328 = vadd.f32 %v326, %v327
        %v329 = vrot.slane %v328, 2
        %v330 = vadd.f32 %v328, %v329
        %v331 = vrot.slane %v330, 1
        %v332 = vadd.f32 %v330, %v331
        %v333 = vsel %vm287, %v281, 0.0
        %v334 = vsel %vm287, %v282, 0.0
        %v335 = vadd.f32 %v333, %v334
        %v336 = vrot.slane %v335, 4
        %v337 = vadd.f32 %v335, %v336
        %v338 = vrot.slane %v337, 2
        %v339 = vadd.f32 %v337, %v338
        %v340 = vrot.slane %v339, 1
        %v341 = vadd.f32 %v339, %v340
        %v342 = vsel %vm287, %v283, 0.0
        %v343 = vsel %vm287, %v284, 0.0
        %v344 = vadd.f32 %v342, %v343
        %v345 = vrot.slane %v344, 4
        %v346 = vadd.f32 %v344, %v345
        %v347 = vrot.slane %v346, 2
        %v348 = vadd.f32 %v346, %v347
        %v349 = vrot.slane %v348, 1
        %v350 = vadd.f32 %v348, %v349
        %v351 = vsel %vm287, %v285, 0.0
        %v352 = vsel %vm287, %v286, 0.0
        %v353 = vadd.f32 %v351, %v352
        %v354 = vrot.slane %v353, 4
        %v355 = vadd.f32 %v353, %v354
        %v356 = vrot.slane %v355, 2
        %v357 = vadd.f32 %v355, %v356
        %v358 = vrot.slane %v357, 1
        %v359 = vadd.f32 %v357, %v358
        %vm368 = vcmask 1041409
        %v369 = vsel %vm368, %v305, %v296
        %vm370 = vcmask 1042434
        %v371 = vsel %vm370, %v314, %v369
        %vm372 = vcmask 1043459
        %v373 = vsel %vm372, %v323, %v371
        %vm374 = vcmask 1044484
        %v375 = vsel %vm374, %v332, %v373
        %vm376 = vcmask 1045509
        %v377 = vsel %vm376, %v341, %v375
        %vm378 = vcmask 1046534
        %v379 = vsel %vm378, %v350, %v377
        %vm380 = vcmask 1047559
        %v381 = vsel %vm380, %v359, %v379
        %v383 = vadd.f32 %v254, %v381
        %384 = vst.msk [vmem:[#allocation2] sm:$0xff] %vm287, %v383
        %p385 = scmp.eq.s32.totalorder %s26, 1
        // Predicated region
        $region45: #{tpu_custom_call.1} parent=31 // pred_check
          %p386 = pneg %p385
        $region46: #{tpu_custom_call.1} parent=31 // pred_check_branch
          %388 = sbr.rel (%p386) target = $region48
        $region47: #{tpu_custom_call.1} parent=31 // pred_region
          %v389 = vld [vmem:[#allocation2] sm:$0xff]
          %v390 = vld [vmem:[#allocation6] sm:$0xff]
          %v391 = vld [vmem:[#allocation6 + $0x8] sm:$0xff]
          %v392 = vld [vmem:[#allocation6 + $0x10] sm:$0xff]
          %v393 = vld [vmem:[#allocation6 + $0x18] sm:$0xff]
          %v394 = vld [vmem:[%s2] sm:$0x1]
          %v396 = vlaneseq
          %v397 = vshrl.u32 %v396, 7
          %v398 = vsub.s32 0, %v397
          %v399 = vrot.slane %v394, %v398
          %v402 = vsel %vm287, %v389, 0
          %404 = vmatprep.subr.mxu0 0.0
          %405 = vmatpush1.msra.mxu0 %v390
          %406 = vmatprep.subr.mxu0 0.0
          %407 = vmatpush1.msra.mxu0 %v391
          %408 = vmatprep.subr.mxu0 0.0
          %409 = vmatpush1.msra.mxu0 %v392
          %410 = vmatprep.subr.mxu0 0.0
          %411 = vmatpush1.msra.mxu0 %v393
          %412 = vmatprep.subr.mxu0 0.0
          %413 = vmatpush1.msra.mxu0 0.0
          %414 = vmatprep.subr.mxu0 0.0
          %415 = vmatpush1.msra.mxu0 0.0
          %416 = vmatprep.subr.mxu0 0.0
          %417 = vmatpush1.msra.mxu0 0.0
          %418 = vmatprep.subr.mxu0 0.0
          %419 = vmatpush1.msra.mxu0 0.0
          %420 = vmatprep.subr.mxu0 0.0
          %421 = vmatpush1.msra.mxu0 0.0
          %422 = vmatprep.subr.mxu0 0.0
          %423 = vmatpush1.msra.mxu0 0.0
          %424 = vmatprep.subr.mxu0 0.0
          %425 = vmatpush1.msra.mxu0 0.0
          %426 = vmatprep.subr.mxu0 0.0
          %427 = vmatpush1.msra.mxu0 0.0
          %428 = vmatprep.subr.mxu0 0.0
          %429 = vmatpush1.msra.mxu0 0.0
          %430 = vmatprep.subr.mxu0 0.0
          %431 = vmatpush1.msra.mxu0 0.0
          %432 = vmatprep.subr.mxu0 0.0
          %433 = vmatpush1.msra.mxu0 0.0
          %434 = vmatprep.subr.mxu0 0.0
          %435 = vmatpush1.msra.mxu0 0.0
          %436 = vmatprep.subr.mxu0 0.0
          %437 = vmatpush1.msra.mxu0 0.0
          %438 = vmatprep.subr.mxu0 0.0
          %439 = vmatpush1.msra.mxu0 0.0
          %440 = vmatprep.subr.mxu0 0.0
          %441 = vmatpush1.msra.mxu0 0.0
          %442 = vmatprep.subr.mxu0 0.0
          %443 = vmatpush1.msra.mxu0 0.0
          %444 = vmatprep.subr.mxu0 0.0
          %445 = vmatpush1.msra.mxu0 0.0
          %446 = vmatprep.subr.mxu0 0.0
          %447 = vmatpush1.msra.mxu0 0.0
          %448 = vmatprep.subr.mxu0 0.0
          %449 = vmatpush1.msra.mxu0 0.0
          %450 = vmatprep.subr.mxu0 0.0
          %451 = vmatpush1.msra.mxu0 0.0
          %452 = vmatprep.subr.mxu0 0.0
          %453 = vmatpush1.msra.mxu0 0.0
          %454 = vmatprep.subr.mxu0 0.0
          %455 = vmatpush1.msra.mxu0 0.0
          %456 = vmatprep.subr.mxu0 0.0
          %457 = vmatpush1.msra.mxu0 0.0
          %458 = vmatprep.subr.mxu0 0.0
          %459 = vmatpush1.msra.mxu0 0.0
          %460 = vmatprep.subr.mxu0 0.0
          %461 = vmatpush1.msra.mxu0 0.0
          %462 = vmatprep.subr.mxu0 0.0
          %463 = vmatpush1.msra.mxu0 0.0
          %464 = vmatprep.subr.mxu0 0.0
          %465 = vmatpush1.msra.mxu0 0.0
          %466 = vmatprep.subr.mxu0 0.0
          %467 = vmatpush1.msra.mxu0 0.0
          %468 = vmatprep.mubr.f32.mxu0 0.0
          %469 = vmatmul.mubr.f32.gmra.mrb[0].mxu0 %v402
          %v470 = vpop.f32.mrb[0].mxu0
          %v471 = vadd.f32 %v399, %v470
          %v472 = vpop.f32.mrb[0].mxu0
          %473 = vdwg.mxu0
          %474 = vmax.xlane.f32.xlu0 %v471
          %v475 = vpop.xlane.xlu0 %474
          %v476 = vsub.f32 %v471, %v475
          %v477 = vmul.f32 %v476, 1.442695
          %v478 = vpow.pop %v477
          %479 = vadd.xlane.f32.xlu0 %v478
          %v480 = vpop.xlane.xlu0 %479
          %v481 = vlog2.pop %v480
          %v482 = vmul.f32 %v481, 0.6931472
          %v483 = vsub.f32 %v476, %v482
          %484 = vst [vmem:[%s245] sm:$0xff] %v483
        $region48: #{tpu_custom_call.1} parent=31 // pred_fallthru
          _
        %s485 = sand.u32 %s111, 1
        %s486 = scalar_lea.sflag [#allocation5], %s485
        %s487 = sand.u32 %s111, 1
        %s488 = smul.addr %s487, 8
        %s489 = scalar_lea.vmem [#allocation8], %s488
        // Predicated region
        $region49: #{tpu_custom_call.1} parent=31 // pred_check
          %p490 = pneg %p121
        $region50: #{tpu_custom_call.1} parent=31 // pred_check_branch
          %492 = sbr.rel (%p490) target = $region52
        $region51: #{tpu_custom_call.1} parent=31 // pred_region
          %s494 = ssub.s32 128, 128
          %495 = vsyncadd %s486, %s494
          %s496 = smul.addr %s25, 128
          %s497 = scalar_lea.hbm %s3, %s496
          %s499 = sshll.u32 %s489, 4
          %s500 = int_to_ptr.vmem [resolvable:$true] %s499
          %502 = dma.vmem_to_hbm [thread:$0]  %s500, 128, %s497, %s486
        $region52: #{tpu_custom_call.1} parent=31 // pred_fallthru
          _
      $region32: #{tpu_custom_call.1} parent=5 // pred_fallthru
        _
      %p503 = scmp.le.s32.totalorder 2, %s16
      // Predicated region
      $region53: #{tpu_custom_call.1} parent=5 // pred_check
        %p504 = pneg %p503
      $region54: #{tpu_custom_call.1} parent=5 // pred_check_branch
        %506 = sbr.rel (%p504) target = $region56
      $region55: #{tpu_custom_call.1} parent=5 // pred_region
        %s507 = ssub.s32 %s16, 2
        // Predicated region
        $region57: #{tpu_custom_call.1} parent=55 // pred_check
          %p508 = pneg %p127
        $region58: #{tpu_custom_call.1} parent=55 // pred_check_branch
          %510 = sbr.rel (%p508) target = $region60
        $region59: #{tpu_custom_call.1} parent=55 // pred_region
          %s511 = sand.u32 %s112, 1
          %s512 = scalar_lea.sflag [#allocation5], %s511
          %s513 = sand.u32 %s112, 1
          %s514 = smul.addr %s513, 8
          %s515 = scalar_lea.vmem [#allocation8], %s514
          %516 = dma.done %s512, 128
        $region60: #{tpu_custom_call.1} parent=55 // pred_fallthru
          _
      $region56: #{tpu_custom_call.1} parent=5 // pred_fallthru
        _
    $region6: #{tpu_custom_call.1} parent=1 // loop_footer
      %s20 = sadd.s32 1, %s16
    $region7: #{tpu_custom_call.1} parent=1 // loop_footer_branch
      %15 = sbr.rel target = $region3
    $region8: #{tpu_custom_call.1} parent=1 // loop_exit
      _
    %517 = vsyncpa [#allocation4], 1
    %s518 = scalar_lea.sflag [#allocation4], 1
    %519 = vsyncpa %s518, 1
    %520 = vsyncpa [#allocation7], 1
    %521 = vsyncpa [#allocation5], 1
    %s522 = scalar_lea.sflag [#allocation5], 1
    %523 = vsyncpa %s522, 1

</llo_original>
